<compile_context>
chip_gen: v6e
topology: v6e:2x2x1
jax: 0.10.0
libtpu: 0.0.40
codegen_flags: <defaults>
</compile_context>

<pallas_src>
import jax
import jax.numpy as jnp
from jax.experimental import pallas as pl
from jax.experimental.pallas import tpu as pltpu


def _make_series_decomp_kernel(K, front_n, end_n, L):
    inv_k = 1.0 / float(K)

    def kernel(x_ref, res_ref, mean_ref):
        x = x_ref[...].astype(jnp.float32)          # (BT, L, C)
        bt, _, c = x.shape

        # Edge-replication padding along the sequence axis (matches torch.cat of
        # repeated first/last rows).
        parts = []
        if front_n > 0:
            parts.append(jnp.broadcast_to(x[:, 0:1, :], (bt, front_n, c)))
        parts.append(x)
        if end_n > 0:
            parts.append(jnp.broadcast_to(x[:, L - 1:L, :], (bt, end_n, c)))
        xp = jnp.concatenate(parts, axis=1) if len(parts) > 1 else x  # (BT, L+K-1, C)

        # Single-pass sliding-window sum: K static shifted slices, then one multiply
        # by the precomputed reciprocal (no per-window mean reductions).
        acc = xp[:, 0:L, :]
        for k in range(1, K):
            acc = acc + xp[:, k:k + L, :]
        mm = acc * inv_k

        mean_ref[...] = mm.astype(mean_ref.dtype)
        res_ref[...] = (x - mm).astype(res_ref.dtype)

    return kernel


def _pick_batch_tile(B, per_batch_bytes, target_bytes=2 * 1024 * 1024):
    """Largest divisor of B whose (BT, L, C) tile stays under ~2 MiB, while keeping
    at least 2 grid steps (v7x has 2 TensorCores) whenever B >= 2."""
    best = 1
    for d in range(1, B + 1):
        if B % d:
            continue
        if d > 1 and d * per_batch_bytes > target_bytes:
            continue
        if B >= 2 and B // d < 2:
            continue
        best = d
    return best


def series_decomp(x, kernel_size):
    """x: [B, L, C]. Returns (res, moving_mean), both [B, L, C]."""
    B, L, C = x.shape
    K = int(kernel_size)
    front_n = K - 1 - (K - 1) // 2
    end_n = (K - 1) // 2

    itemsize = jnp.dtype(x.dtype).itemsize
    bt = _pick_batch_tile(B, L * C * itemsize)
    grid = (B // bt,)

    kernel = _make_series_decomp_kernel(K, front_n, end_n, L)

    in_spec = pl.BlockSpec((bt, L, C), lambda b: (b, 0, 0))
    out_spec0 = pl.BlockSpec((bt, L, C), lambda b: (b, 0, 0))
    out_spec1 = pl.BlockSpec((bt, L, C), lambda b: (b, 0, 0))

    flops = (K + 2) * B * L * C                      # K-1 adds + mul + sub (approx)
    bytes_accessed = 3 * B * L * C * itemsize        # read x, write res + mean

    res, mean = pl.pallas_call(
        kernel,
        out_shape=(
            jax.ShapeDtypeStruct((B, L, C), x.dtype),
            jax.ShapeDtypeStruct((B, L, C), x.dtype),
        ),
        grid_spec=pltpu.PrefetchScalarGridSpec(
            num_scalar_prefetch=0,
            grid=grid,
            in_specs=[in_spec],
            out_specs=[out_spec0, out_spec1],
        ),
        compiler_params=pltpu.CompilerParams(
            dimension_semantics=("parallel",),
            vmem_limit_bytes=64 * 1024 * 1024,
        ),
        cost_estimate=pl.CostEstimate(
            flops=flops, transcendentals=0, bytes_accessed=bytes_accessed
        ),
    )(x)
    return res, mean


def reference(x, kernel_size):
    """Pure-JAX mirror of the PyTorch series_decomp forward."""
    K = int(kernel_size)
    front_n = K - 1 - (K - 1) // 2
    end_n = (K - 1) // 2
    front = jnp.repeat(x[:, 0:1, :], front_n, axis=1)
    end = jnp.repeat(x[:, -1:, :], end_n, axis=1)
    xp = jnp.concatenate([front, x, end], axis=1)
    L = x.shape[1]
    mm = jnp.stack([jnp.mean(xp[:, t:t + K, :], axis=1) for t in range(L)], axis=1)
    return x - mm, mm


if __name__ == "__main__":
    B, L, C, K = 4, 32, 128, 5
    key = jax.random.PRNGKey(0)
    x = jax.random.normal(key, (B, L, C), dtype=jnp.float32)

    res, mean = series_decomp(x, K)
    res = jax.block_until_ready(res)
    mean = jax.block_until_ready(mean)

    res_ref, mean_ref = reference(x, K)
    assert res.shape == (B, L, C) and mean.shape == (B, L, C)
    assert jnp.allclose(mean, mean_ref, atol=1e-5, rtol=1e-5), "moving_mean mismatch"
    assert jnp.allclose(res, res_ref, atol=1e-5, rtol=1e-5), "res mismatch"

    print("KERNEL_OK")
</pallas_src>

<mosaic_0001>
module attributes {stable_mosaic.version = 11 : i64} {
  func.func @kernel(%arg0: i32, %arg1: memref<2x32x128xf32, #tpu.memory_space<vmem>>, %arg2: memref<2x32x128xf32, #tpu.memory_space<vmem>>, %arg3: memref<2x32x128xf32, #tpu.memory_space<vmem>>) attributes {dimension_semantics = [#tpu.dimension_semantics<parallel>], iteration_bounds = array<i64: 2>, scalar_prefetch = 0 : i64, scratch_operands = 0 : i64, tpu.core_type = #tpu.core_type<tc>, window_params = [{transform_indices = @transform_0, window_bounds = array<i64: 2, 32, 128>}, {transform_indices = @transform_1, window_bounds = array<i64: 2, 32, 128>}, {transform_indices = @transform_2, window_bounds = array<i64: 2, 32, 128>}]} {
    %c0 = arith.constant 0 : index
    %c0_0 = arith.constant 0 : index
    %c0_1 = arith.constant 0 : index
    %0 = vector.load %arg1[%c0, %c0_0, %c0_1] : memref<2x32x128xf32, #tpu.memory_space<vmem>>, vector<2x32x128xf32>
    %1 = vector.extract_strided_slice %0 {offsets = [0, 0, 0], sizes = [2, 1, 128], strides = [1, 1, 1]} : vector<2x32x128xf32> to vector<2x1x128xf32>
    %2 = vector.shape_cast %1 : vector<2x1x128xf32> to vector<2x1x128xf32>
    %3 = vector.broadcast %2 : vector<2x1x128xf32> to vector<2x2x128xf32>
    %4 = vector.extract_strided_slice %0 {offsets = [0, 31, 0], sizes = [2, 1, 128], strides = [1, 1, 1]} : vector<2x32x128xf32> to vector<2x1x128xf32>
    %5 = vector.shape_cast %4 : vector<2x1x128xf32> to vector<2x1x128xf32>
    %6 = vector.broadcast %5 : vector<2x1x128xf32> to vector<2x2x128xf32>
    %7 = tpu.concatenate %3, %0, %6 in 1 : vector<2x2x128xf32>, vector<2x32x128xf32>, vector<2x2x128xf32> -> vector<2x36x128xf32>
    %8 = vector.extract_strided_slice %7 {offsets = [0, 0, 0], sizes = [2, 32, 128], strides = [1, 1, 1]} : vector<2x36x128xf32> to vector<2x32x128xf32>
    %9 = vector.extract_strided_slice %7 {offsets = [0, 1, 0], sizes = [2, 32, 128], strides = [1, 1, 1]} : vector<2x36x128xf32> to vector<2x32x128xf32>
    %10 = arith.addf %8, %9 : vector<2x32x128xf32>
    %11 = vector.extract_strided_slice %7 {offsets = [0, 2, 0], sizes = [2, 32, 128], strides = [1, 1, 1]} : vector<2x36x128xf32> to vector<2x32x128xf32>
    %12 = arith.addf %10, %11 : vector<2x32x128xf32>
    %13 = vector.extract_strided_slice %7 {offsets = [0, 3, 0], sizes = [2, 32, 128], strides = [1, 1, 1]} : vector<2x36x128xf32> to vector<2x32x128xf32>
    %14 = arith.addf %12, %13 : vector<2x32x128xf32>
    %15 = vector.extract_strided_slice %7 {offsets = [0, 4, 0], sizes = [2, 32, 128], strides = [1, 1, 1]} : vector<2x36x128xf32> to vector<2x32x128xf32>
    %16 = arith.addf %14, %15 : vector<2x32x128xf32>
    %cst = arith.constant 2.000000e-01 : f32
    %17 = vector.broadcast %cst : f32 to vector<2x32x128xf32>
    %18 = arith.mulf %16, %17 : vector<2x32x128xf32>
    %c0_2 = arith.constant 0 : index
    %c0_3 = arith.constant 0 : index
    %c0_4 = arith.constant 0 : index
    %19 = vector.load %arg3[%c0_2, %c0_3, %c0_4] : memref<2x32x128xf32, #tpu.memory_space<vmem>>, vector<2x32x128xf32>
    tpu.vector_store %arg3[%c0_2, %c0_3, %c0_4], %18 {strides = array<i32>} : memref<2x32x128xf32, #tpu.memory_space<vmem>>, vector<2x32x128xf32>,
    %20 = arith.subf %0, %18 : vector<2x32x128xf32>
    %c0_5 = arith.constant 0 : index
    %c0_6 = arith.constant 0 : index
    %c0_7 = arith.constant 0 : index
    %21 = vector.load %arg2[%c0_5, %c0_6, %c0_7] : memref<2x32x128xf32, #tpu.memory_space<vmem>>, vector<2x32x128xf32>
    tpu.vector_store %arg2[%c0_5, %c0_6, %c0_7], %20 {strides = array<i32>} : memref<2x32x128xf32, #tpu.memory_space<vmem>>, vector<2x32x128xf32>,
    return
  }
  func.func @transform_0(%arg0: i32) -> (i32, i32, i32) {
    %c0_i32 = arith.constant 0 : i32
    %c0_i32_0 = arith.constant 0 : i32
    %c0_i32_1 = arith.constant 0 : i32
    return %arg0, %c0_i32, %c0_i32_0 : i32, i32, i32
  }
  func.func @transform_1(%arg0: i32) -> (i32, i32, i32) {
    %c0_i32 = arith.constant 0 : i32
    %c0_i32_0 = arith.constant 0 : i32
    %c0_i32_1 = arith.constant 0 : i32
    return %arg0, %c0_i32, %c0_i32_0 : i32, i32, i32
  }
  func.func @transform_2(%arg0: i32) -> (i32, i32, i32) {
    %c0_i32 = arith.constant 0 : i32
    %c0_i32_0 = arith.constant 0 : i32
    %c0_i32_1 = arith.constant 0 : i32
    return %arg0, %c0_i32, %c0_i32_0 : i32, i32, i32
  }
}

</mosaic_0001>

<llo_original>
// kernel: tpu_custom_call.1
$region0: #{tpu_custom_call.1}
  #allocation0 [shape = 'u32[]', space=smem, size = 0x4, offset = 0x4, fixed_abs, tag = 'smem constant byte address 0x4 - core index']
  #allocation1 [shape = 'u32[144,128]{1,0:T(1,128)}', space=vmem, size = 0x12000, scoped, tag = 'internal scratch']
  %s0 = inlined_call_operand.hbm [shape: f32[4,32,128], index: 0, kind: input, shape index: {}]
  %s1 = inlined_call_operand.hbm [shape: f32[4,32,128], index: 1, kind: output, shape index: {0}]
  %s2 = inlined_call_operand.hbm [shape: f32[4,32,128], index: 2, kind: output, shape index: {1}]
  %3 = xla_tuple %s1, %s2
  %s4 = sld [smem:[#allocation0]]
  $region49: #{tpu_custom_call.1} parent=0
    _
  %s6 = ssub.s32 1, %s4
  %s7 = scalar_select 0, %s6, %s4
  $region1: #{tpu_custom_call.1} parent=0
    #allocation2 [shape = 'u8[65536]{0}', space=vmem, size = 0x10000, scoped, tag = 'input window, operand 0']
    #allocation3 [shape = 's32[2]{0}', space=sflag, size = 0x8, scoped, tag = 'scoped memory for tpu_custom_call.1']
    #allocation4 [shape = 's32[2]{0}', space=sflag, size = 0x8, scoped, tag = 'scoped memory for tpu_custom_call.1']
    #allocation5 [shape = 'u8[65536]{0}', space=vmem, size = 0x10000, scoped, tag = 'output window, operand 0']
    #allocation6 [shape = 'u8[65536]{0}', space=vmem, size = 0x10000, scoped, tag = 'output window, operand 1']
    #allocation7 [shape = 's32[2]{0}', space=sflag, size = 0x8, scoped, tag = 'scoped memory for tpu_custom_call.1']
    %8 = vsyncpa [#allocation3], 0
    %s9 = scalar_lea.sflag [#allocation3], 1
    %10 = vsyncpa %s9, 0
    %11 = vsyncpa [#allocation4], 0
    %s12 = scalar_lea.sflag [#allocation4], 1
    %13 = vsyncpa %s12, 0
    %14 = vsyncpa [#allocation7], 0
    %s15 = scalar_lea.sflag [#allocation7], 1
    %16 = vsyncpa %s15, 0
    loop: start=0, step=1, limit=4
    $region2: #{tpu_custom_call.1} parent=1 // loop_pre_header
      _
    $region3: #{tpu_custom_call.1} parent=1 // loop_header
      %s18 = sphi 0, %s22
      %p19 = scmp.ge.s32.totalorder %s18, 4
      %s28 = sphi 0, %s30
      %s31 = sphi 0, %s28
      %s32 = sphi 0, %s31
      %s48 = sphi 0, %s32
      %s54 = sphi 0, %s56
      %s57 = sphi 0, %s54
      %s58 = sphi 0, %s57
      %s74 = sphi 0, %s58
      %s80 = sphi 0, %s82
      %s83 = sphi 0, %s80
      %s84 = sphi 0, %s83
      %s100 = sphi 0, %s84
    $region4: #{tpu_custom_call.1} parent=1 // loop_header_branch
      %21 = sbr.rel (%p19) target = $region8
    $region5: #{tpu_custom_call.1} parent=1 // loop_body
      %s23 = ssub.s32 %s18, 1
      %s24 = ssub.s32 %s18, 2
      %s25 = sadd.s32 %s18, 1
      %s26 = ssub.s32 %s18, %s25
      %p27 = scmp.eq.s32.totalorder %s26, 0
      %s29 = sadd.s32 %s28, 1
      %s30 = scalar_select %p27, %s28, %s29
      %p33 = pneg %p27
      %p34 = scmp.eq.s32.totalorder %s18, 1
      %p35 = por %p33, %p34
      %p36 = scmp.ne.s32.totalorder %s28, %s31
      %p37 = scmp.eq.s32.totalorder %s18, 0
      %p38 = por %p36, %p37
      %p39 = scmp.ne.s32.totalorder %s28, %s31
      %p40 = scmp.eq.s32.totalorder %s23, 1
      %p41 = por %p39, %p40
      %p42 = scmp.ne.s32.totalorder %s31, %s32
      %p43 = scmp.eq.s32.totalorder %s23, 0
      %p44 = por %p42, %p43
      %p45 = scmp.ne.s32.totalorder %s31, %s32
      %p46 = scmp.eq.s32.totalorder %s24, 1
      %p47 = por %p45, %p46
      %p49 = scmp.ne.s32.totalorder %s32, %s48
      %p50 = scmp.eq.s32.totalorder %s24, 0
      %p51 = por %p49, %p50
      %s52 = ssub.s32 %s18, %s25
      %p53 = scmp.eq.s32.totalorder %s52, 0
      %s55 = sadd.s32 %s54, 1
      %s56 = scalar_select %p53, %s54, %s55
      %p59 = pneg %p53
      %p60 = scmp.eq.s32.totalorder %s18, 1
      %p61 = por %p59, %p60
      %p62 = scmp.ne.s32.totalorder %s54, %s57
      %p63 = scmp.eq.s32.totalorder %s18, 0
      %p64 = por %p62, %p63
      %p65 = scmp.ne.s32.totalorder %s54, %s57
      %p66 = scmp.eq.s32.totalorder %s23, 1
      %p67 = por %p65, %p66
      %p68 = scmp.ne.s32.totalorder %s57, %s58
      %p69 = scmp.eq.s32.totalorder %s23, 0
      %p70 = por %p68, %p69
      %p71 = scmp.ne.s32.totalorder %s57, %s58
      %p72 = scmp.eq.s32.totalorder %s24, 1
      %p73 = por %p71, %p72
      %p75 = scmp.ne.s32.totalorder %s58, %s74
      %p76 = scmp.eq.s32.totalorder %s24, 0
      %p77 = por %p75, %p76
      %s78 = ssub.s32 %s18, %s25
      %p79 = scmp.eq.s32.totalorder %s78, 0
      %s81 = sadd.s32 %s80, 1
      %s82 = scalar_select %p79, %s80, %s81
      %p85 = pneg %p79
      %p86 = scmp.eq.s32.totalorder %s18, 1
      %p87 = por %p85, %p86
      %p88 = scmp.ne.s32.totalorder %s80, %s83
      %p89 = scmp.eq.s32.totalorder %s18, 0
      %p90 = por %p88, %p89
      %p91 = scmp.ne.s32.totalorder %s80, %s83
      %p92 = scmp.eq.s32.totalorder %s23, 1
      %p93 = por %p91, %p92
      %p94 = scmp.ne.s32.totalorder %s83, %s84
      %p95 = scmp.eq.s32.totalorder %s23, 0
      %p96 = por %p94, %p95
      %p97 = scmp.ne.s32.totalorder %s83, %s84
      %p98 = scmp.eq.s32.totalorder %s24, 1
      %p99 = por %p97, %p98
      %p101 = scmp.ne.s32.totalorder %s84, %s100
      %p102 = scmp.eq.s32.totalorder %s24, 0
      %p103 = por %p101, %p102
      %p104 = scmp.le.s32.totalorder 1, %s18
      %p105 = scmp.lt.s32.totalorder %s18, 3
      %p106 = pnand %p104, %p105
      %p107 = pneg %p106
      // Predicated region
      $region9: #{tpu_custom_call.1} parent=5 // pred_check
        _
      $region10: #{tpu_custom_call.1} parent=5 // pred_check_branch
        %109 = sbr.rel (%p106) target = $region12
      $region11: #{tpu_custom_call.1} parent=5 // pred_region
        %s110 = ssub.s32 %s18, 1
      $region12: #{tpu_custom_call.1} parent=5 // pred_fallthru
        _
      %p111 = scmp.lt.s32.totalorder %s18, 2
      // Predicated region
      $region13: #{tpu_custom_call.1} parent=5 // pred_check
        %p112 = pneg %p111
      $region14: #{tpu_custom_call.1} parent=5 // pred_check_branch
        %114 = sbr.rel (%p112) target = $region16
      $region15: #{tpu_custom_call.1} parent=5 // pred_region
        // Predicated region
        $region17: #{tpu_custom_call.1} parent=15 // pred_check
          %p115 = pneg %p38
        $region18: #{tpu_custom_call.1} parent=15 // pred_check_branch
          %117 = sbr.rel (%p115) target = $region20
        $region19: #{tpu_custom_call.1} parent=15 // pred_region
          %s118 = sand.u32 %s28, 1
          %s119 = scalar_lea.sflag [#allocation3], %s118
          %s120 = sand.u32 %s28, 1
          %s121 = smul.addr %s120, 64
          %s122 = scalar_lea.vmem [#allocation2], %s121
          %s123 = smul.u32 2, %s18
          %s125 = ssub.s32 1024, 1024
          %126 = vsyncadd %s119, %s125
          %s127 = smul.addr %s123, 4
          %s128 = smul.addr %s127, 128
          %s129 = scalar_lea.hbm %s0, %s128
          %s130 = sshll.u32 %s122, 4
          %s131 = int_to_ptr.vmem [resolvable:$true] %s130
          %136 = dma.hbm_to_vmem [thread:$0]  %s129, 1024, %s131, %s119, 128, 128, 8
        $region20: #{tpu_custom_call.1} parent=15 // pred_fallthru
          _
      $region16: #{tpu_custom_call.1} parent=5 // pred_fallthru
        _
      %p137 = scmp.le.s32.totalorder 1, %s18
      %p138 = scmp.lt.s32.totalorder %s18, 3
      %p139 = pnand %p137, %p138
      %p140 = pneg %p139
      // Predicated region
      $region21: #{tpu_custom_call.1} parent=5 // pred_check
        _
      $region22: #{tpu_custom_call.1} parent=5 // pred_check_branch
        %142 = sbr.rel (%p139) target = $region24
      $region23: #{tpu_custom_call.1} parent=5 // pred_region
        %s143 = ssub.s32 %s18, 1
        %s144 = sand.u32 %s31, 1
        %s145 = scalar_lea.sflag [#allocation3], %s144
        %s146 = sand.u32 %s31, 1
        %s147 = smul.addr %s146, 64
        %s148 = scalar_lea.vmem [#allocation2], %s147
        // Predicated region
        $region25: #{tpu_custom_call.1} parent=23 // pred_check
          %p149 = pneg %p44
        $region26: #{tpu_custom_call.1} parent=23 // pred_check_branch
          %151 = sbr.rel (%p149) target = $region28
        $region27: #{tpu_custom_call.1} parent=23 // pred_region
          %152 = dma.done %s145, 1024
        $region28: #{tpu_custom_call.1} parent=23 // pred_fallthru
          _
        %s153 = sand.u32 %s31, 1
        %s154 = scalar_lea.sflag [#allocation3], %s153
        %s155 = sand.u32 %s31, 1
        %s156 = smul.addr %s155, 64
        %s157 = scalar_lea.vmem [#allocation2], %s156
        %p158 = pneg %p44
        %p159 = pneg %p41
        %p160 = pneg %p70
        %p161 = pneg %p67
        %s162 = sand.u32 %s57, 1
        %s163 = scalar_lea.sflag [#allocation4], %s162
        %s164 = sand.u32 %s57, 1
        %s165 = smul.addr %s164, 64
        %s166 = scalar_lea.vmem [#allocation5], %s165
        %p167 = pneg %p96
        %p168 = pneg %p93
        %s169 = sand.u32 %s83, 1
        %s170 = scalar_lea.sflag [#allocation7], %s169
        %s171 = sand.u32 %s83, 1
        %s172 = smul.addr %s171, 64
        %s173 = scalar_lea.vmem [#allocation6], %s172
        %s174 = smul.u32 2, %s23
        %s175 = smul.u32 2, %s23
        %s176 = smul.u32 2, %s23
        %v177 = vld [vmem:[%s148] sm:$0xff]
        %v178 = vld [vmem:[%s148 + $0x8] sm:$0xff]
        %v179 = vld [vmem:[%s148 + $0x10] sm:$0xff]
        %v180 = vld [vmem:[%s148 + $0x18] sm:$0xff]
        %v181 = vld [vmem:[%s148 + $0x20] sm:$0xff]
        %v182 = vld [vmem:[%s148 + $0x28] sm:$0xff]
        %v183 = vld [vmem:[%s148 + $0x30] sm:$0xff]
        %v184 = vld [vmem:[%s148 + $0x38] sm:$0xff]
        %v185 = vlaneseq
        %v186 = vshrl.u32 %v185, 7
        %v187 = vsub.s32 0, %v186
        %v188 = vrot.slane %v177, %v187
        %v189 = vlaneseq
        %v190 = vshrl.u32 %v189, 7
        %v191 = vsub.s32 0, %v190
        %v192 = vrot.slane %v181, %v191
        %v193 = vlaneseq
        %v194 = vshrl.u32 %v193, 7
        %v195 = vsub.s32 7, %v194
        %v196 = vrot.slane %v180, %v195
        %v197 = vlaneseq
        %v198 = vshrl.u32 %v197, 7
        %v199 = vsub.s32 7, %v198
        %v200 = vrot.slane %v184, %v199
        %vm209 = vcmask 1041408
        %v210 = vrot.slane %v177, 6
        %v211 = vrot.slane %v178, 6
        %v212 = vsel %vm209, %v210, %v211
        %v213 = vrot.slane %v179, 6
        %v214 = vsel %vm209, %v211, %v213
        %v215 = vrot.slane %v180, 6
        %v216 = vsel %vm209, %v213, %v215
        %v217 = vrot.slane %v181, 6
        %v218 = vrot.slane %v182, 6
        %v219 = vsel %vm209, %v217, %v218
        %v220 = vrot.slane %v183, 6
        %v221 = vsel %vm209, %v218, %v220
        %v222 = vrot.slane %v184, 6
        %v223 = vsel %vm209, %v220, %v222
        %v234 = vsel %vm209, %v188, %v210
        %v235 = vsel %vm209, %v192, %v217
        %v236 = vsel %vm209, %v215, %v196
        %v237 = vsel %vm209, %v222, %v200
        %vm242 = vcmask 1046528
        %v243 = vrot.slane %v234, 1
        %v244 = vrot.slane %v212, 1
        %v245 = vsel %vm242, %v243, %v244
        %v246 = vrot.slane %v214, 1
        %v247 = vsel %vm242, %v244, %v246
        %v248 = vrot.slane %v216, 1
        %v249 = vsel %vm242, %v246, %v248
        %v250 = vrot.slane %v236, 1
        %v251 = vsel %vm242, %v248, %v250
        %v252 = vrot.slane %v235, 1
        %v253 = vrot.slane %v219, 1
        %v254 = vsel %vm242, %v252, %v253
        %v255 = vrot.slane %v221, 1
        %v256 = vsel %vm242, %v253, %v255
        %v257 = vrot.slane %v223, 1
        %v258 = vsel %vm242, %v255, %v257
        %v259 = vrot.slane %v237, 1
        %v260 = vsel %vm242, %v257, %v259
        %v269 = vadd.f32 %v234, %v245
        %v270 = vadd.f32 %v212, %v247
        %v271 = vadd.f32 %v214, %v249
        %v272 = vadd.f32 %v216, %v251
        %v273 = vadd.f32 %v235, %v254
        %v274 = vadd.f32 %v219, %v256
        %v275 = vadd.f32 %v221, %v258
        %v276 = vadd.f32 %v223, %v260
        %vm277 = vcmask 1045504
        %v278 = vrot.slane %v234, 2
        %v279 = vrot.slane %v212, 2
        %v280 = vsel %vm277, %v278, %v279
        %v281 = vrot.slane %v214, 2
        %v282 = vsel %vm277, %v279, %v281
        %v283 = vrot.slane %v216, 2
        %v284 = vsel %vm277, %v281, %v283
        %v285 = vrot.slane %v236, 2
        %v286 = vsel %vm277, %v283, %v285
        %v287 = vrot.slane %v235, 2
        %v288 = vrot.slane %v219, 2
        %v289 = vsel %vm277, %v287, %v288
        %v290 = vrot.slane %v221, 2
        %v291 = vsel %vm277, %v288, %v290
        %v292 = vrot.slane %v223, 2
        %v293 = vsel %vm277, %v290, %v292
        %v294 = vrot.slane %v237, 2
        %v295 = vsel %vm277, %v292, %v294
        %v304 = vadd.f32 %v269, %v280
        %v305 = vadd.f32 %v270, %v282
        %v306 = vadd.f32 %v271, %v284
        %v307 = vadd.f32 %v272, %v286
        %v308 = vadd.f32 %v273, %v289
        %v309 = vadd.f32 %v274, %v291
        %v310 = vadd.f32 %v275, %v293
        %v311 = vadd.f32 %v276, %v295
        %vm312 = vcmask 1044480
        %v313 = vrot.slane %v234, 3
        %v314 = vrot.slane %v212, 3
        %v315 = vsel %vm312, %v313, %v314
        %v316 = vrot.slane %v214, 3
        %v317 = vsel %vm312, %v314, %v316
        %v318 = vrot.slane %v216, 3
        %v319 = vsel %vm312, %v316, %v318
        %v320 = vrot.slane %v236, 3
        %v321 = vsel %vm312, %v318, %v320
        %v322 = vrot.slane %v235, 3
        %v323 = vrot.slane %v219, 3
        %v324 = vsel %vm312, %v322, %v323
        %v325 = vrot.slane %v221, 3
        %v326 = vsel %vm312, %v323, %v325
        %v327 = vrot.slane %v223, 3
        %v328 = vsel %vm312, %v325, %v327
        %v329 = vrot.slane %v237, 3
        %v330 = vsel %vm312, %v327, %v329
        %v339 = vadd.f32 %v304, %v315
        %v340 = vadd.f32 %v305, %v317
        %v341 = vadd.f32 %v306, %v319
        %v342 = vadd.f32 %v307, %v321
        %v343 = vadd.f32 %v308, %v324
        %v344 = vadd.f32 %v309, %v326
        %v345 = vadd.f32 %v310, %v328
        %v346 = vadd.f32 %v311, %v330
        %vm347 = vcmask 1043456
        %v348 = vrot.slane %v234, 4
        %v349 = vrot.slane %v212, 4
        %v350 = vsel %vm347, %v348, %v349
        %v351 = vrot.slane %v214, 4
        %v352 = vsel %vm347, %v349, %v351
        %v353 = vrot.slane %v216, 4
        %v354 = vsel %vm347, %v351, %v353
        %v355 = vrot.slane %v236, 4
        %v356 = vsel %vm347, %v353, %v355
        %v357 = vrot.slane %v235, 4
        %v358 = vrot.slane %v219, 4
        %v359 = vsel %vm347, %v357, %v358
        %v360 = vrot.slane %v221, 4
        %v361 = vsel %vm347, %v358, %v360
        %v362 = vrot.slane %v223, 4
        %v363 = vsel %vm347, %v360, %v362
        %v364 = vrot.slane %v237, 4
        %v365 = vsel %vm347, %v362, %v364
        %v374 = vadd.f32 %v339, %v350
        %v375 = vadd.f32 %v340, %v352
        %v376 = vadd.f32 %v341, %v354
        %v377 = vadd.f32 %v342, %v356
        %v378 = vadd.f32 %v343, %v359
        %v379 = vadd.f32 %v344, %v361
        %v380 = vadd.f32 %v345, %v363
        %v381 = vadd.f32 %v346, %v365
        %v382 = vmul.f32 %v374, 0.2
        %v383 = vmul.f32 %v375, 0.2
        %v384 = vmul.f32 %v376, 0.2
        %v385 = vmul.f32 %v377, 0.2
        %v386 = vmul.f32 %v378, 0.2
        %v387 = vmul.f32 %v379, 0.2
        %v388 = vmul.f32 %v380, 0.2
        %v389 = vmul.f32 %v381, 0.2
        %390 = vst [vmem:[%s173] sm:$0xff] %v382
        %391 = vst [vmem:[%s173 + $0x8] sm:$0xff] %v383
        %392 = vst [vmem:[%s173 + $0x10] sm:$0xff] %v384
        %393 = vst [vmem:[%s173 + $0x18] sm:$0xff] %v385
        %394 = vst [vmem:[%s173 + $0x20] sm:$0xff] %v386
        %395 = vst [vmem:[%s173 + $0x28] sm:$0xff] %v387
        %396 = vst [vmem:[%s173 + $0x30] sm:$0xff] %v388
        %397 = vst [vmem:[%s173 + $0x38] sm:$0xff] %v389
        %v398 = vsub.f32 %v177, %v382
        %v399 = vsub.f32 %v178, %v383
        %v400 = vsub.f32 %v179, %v384
        %v401 = vsub.f32 %v180, %v385
        %v402 = vsub.f32 %v181, %v386
        %v403 = vsub.f32 %v182, %v387
        %v404 = vsub.f32 %v183, %v388
        %v405 = vsub.f32 %v184, %v389
        %406 = vst [vmem:[%s166] sm:$0xff] %v398
        %407 = vst [vmem:[%s166 + $0x8] sm:$0xff] %v399
        %408 = vst [vmem:[%s166 + $0x10] sm:$0xff] %v400
        %409 = vst [vmem:[%s166 + $0x18] sm:$0xff] %v401
        %410 = vst [vmem:[%s166 + $0x20] sm:$0xff] %v402
        %411 = vst [vmem:[%s166 + $0x28] sm:$0xff] %v403
        %412 = vst [vmem:[%s166 + $0x30] sm:$0xff] %v404
        %413 = vst [vmem:[%s166 + $0x38] sm:$0xff] %v405
        %s414 = sand.u32 %s57, 1
        %s415 = scalar_lea.sflag [#allocation4], %s414
        %s416 = sand.u32 %s57, 1
        %s417 = smul.addr %s416, 64
        %s418 = scalar_lea.vmem [#allocation5], %s417
        %s419 = sand.u32 %s83, 1
        %s420 = scalar_lea.sflag [#allocation7], %s419
        %s421 = sand.u32 %s83, 1
        %s422 = smul.addr %s421, 64
        %s423 = scalar_lea.vmem [#allocation6], %s422
        // Predicated region
        $region29: #{tpu_custom_call.1} parent=23 // pred_check
          %p424 = pneg %p67
        $region30: #{tpu_custom_call.1} parent=23 // pred_check_branch
          %426 = sbr.rel (%p424) target = $region32
        $region31: #{tpu_custom_call.1} parent=23 // pred_region
          %s427 = smul.u32 2, %s23
          %s429 = ssub.s32 1024, 1024
          %430 = vsyncadd %s415, %s429
          %s431 = smul.addr %s427, 4
          %s432 = smul.addr %s431, 128
          %s433 = scalar_lea.hbm %s1, %s432
          %s434 = sshll.u32 %s418, 4
          %s435 = int_to_ptr.vmem [resolvable:$true] %s434
          %440 = dma.vmem_to_hbm [thread:$0]  %s435, 1024, %s433, %s415, 128, 128, 8
        $region32: #{tpu_custom_call.1} parent=23 // pred_fallthru
          _
        // Predicated region
        $region33: #{tpu_custom_call.1} parent=23 // pred_check
          %p441 = pneg %p93
        $region34: #{tpu_custom_call.1} parent=23 // pred_check_branch
          %443 = sbr.rel (%p441) target = $region36
        $region35: #{tpu_custom_call.1} parent=23 // pred_region
          %s444 = smul.u32 2, %s23
          %s446 = ssub.s32 1024, 1024
          %447 = vsyncadd %s420, %s446
          %s448 = smul.addr %s444, 4
          %s449 = smul.addr %s448, 128
          %s450 = scalar_lea.hbm %s2, %s449
          %s451 = sshll.u32 %s423, 4
          %s452 = int_to_ptr.vmem [resolvable:$true] %s451
          %457 = dma.vmem_to_hbm [thread:$0]  %s452, 1024, %s450, %s420, 128, 128, 8
        $region36: #{tpu_custom_call.1} parent=23 // pred_fallthru
          _
      $region24: #{tpu_custom_call.1} parent=5 // pred_fallthru
        _
      %p458 = scmp.le.s32.totalorder 2, %s18
      // Predicated region
      $region37: #{tpu_custom_call.1} parent=5 // pred_check
        %p459 = pneg %p458
      $region38: #{tpu_custom_call.1} parent=5 // pred_check_branch
        %461 = sbr.rel (%p459) target = $region40
      $region39: #{tpu_custom_call.1} parent=5 // pred_region
        %s462 = ssub.s32 %s18, 2
        // Predicated region
        $region41: #{tpu_custom_call.1} parent=39 // pred_check
          %p463 = pneg %p73
        $region42: #{tpu_custom_call.1} parent=39 // pred_check_branch
          %465 = sbr.rel (%p463) target = $region44
        $region43: #{tpu_custom_call.1} parent=39 // pred_region
          %s466 = sand.u32 %s58, 1
          %s467 = scalar_lea.sflag [#allocation4], %s466
          %s468 = sand.u32 %s58, 1
          %s469 = smul.addr %s468, 64
          %s470 = scalar_lea.vmem [#allocation5], %s469
          %471 = dma.done %s467, 1024
        $region44: #{tpu_custom_call.1} parent=39 // pred_fallthru
          _
        // Predicated region
        $region45: #{tpu_custom_call.1} parent=39 // pred_check
          %p472 = pneg %p99
        $region46: #{tpu_custom_call.1} parent=39 // pred_check_branch
          %474 = sbr.rel (%p472) target = $region48
        $region47: #{tpu_custom_call.1} parent=39 // pred_region
          %s475 = sand.u32 %s84, 1
          %s476 = scalar_lea.sflag [#allocation7], %s475
          %s477 = sand.u32 %s84, 1
          %s478 = smul.addr %s477, 64
          %s479 = scalar_lea.vmem [#allocation6], %s478
          %480 = dma.done %s476, 1024
        $region48: #{tpu_custom_call.1} parent=39 // pred_fallthru
          _
      $region40: #{tpu_custom_call.1} parent=5 // pred_fallthru
        _
    $region6: #{tpu_custom_call.1} parent=1 // loop_footer
      %s22 = sadd.s32 1, %s18
    $region7: #{tpu_custom_call.1} parent=1 // loop_footer_branch
      %17 = sbr.rel target = $region3
    $region8: #{tpu_custom_call.1} parent=1 // loop_exit
      _
    %481 = vsyncpa [#allocation3], 1
    %s482 = scalar_lea.sflag [#allocation3], 1
    %483 = vsyncpa %s482, 1
    %484 = vsyncpa [#allocation4], 1
    %s485 = scalar_lea.sflag [#allocation4], 1
    %486 = vsyncpa %s485, 1
    %487 = vsyncpa [#allocation7], 1
    %s488 = scalar_lea.sflag [#allocation7], 1
    %489 = vsyncpa %s488, 1

</llo_original>
